<compile_context>
chip_gen: v5e
topology: v5e:2x2
jax: 0.10.0
libtpu: 0.0.40
codegen_flags: <defaults>
</compile_context>

<pallas_src>
import functools

import jax
import jax.numpy as jnp
from jax.experimental import pallas as pl
from jax.experimental.pallas import tpu as pltpu

HIDDEN = 64


def _round_up(n, m):
    return ((n + m - 1) // m) * m


def _cdiv(a, b):
    return (a + b - 1) // b


def critic_kernel(x_ref, w1_ref, b1_ref, w2_ref, b2_ref, out_ref):
    # FC1 (packed): (tb_p, r*obs_dim) @ block-diag (r*obs_dim, r*64) on the MXU
    # with f32 accumulation; bias + ReLU on the VPU.
    h = jnp.dot(x_ref[...], w1_ref[...], preferred_element_type=jnp.float32)
    h = jnp.maximum(h + b1_ref[...], 0.0)                     # (tb_p, r*64)

    # FC3 (packed): the per-sample 64-lane reduce is expressed as a second
    # (tiny-N) block-diagonal matmul -> (tb_p, r); b2 is a scalar from SMEM.
    v = jnp.dot(h, w2_ref[...], preferred_element_type=jnp.float32)
    out_ref[...] = (v + b2_ref[0, 0]).astype(out_ref.dtype)


@functools.partial(jax.jit, static_argnames=("block_b",))
def critic_forward(x, w1, b1, w2, b2, *, block_b=8192):
    """x: (B, obs_dim) f32, w1: (obs_dim, 64), b1: (64,), w2: (64, 1), b2: (1,)
    -> (B, 1) f32."""
    B, obs_dim = x.shape
    hidden = w1.shape[1]

    if B == 0:
        return jnp.zeros((0, 1), x.dtype)

    # Lane-packing factor: pack r samples per VMEM row so streamed x rows are
    # (close to) 128 lanes wide. Capped at 8 to keep the block-diagonal
    # weights / packed hidden width small.
    r = max(1, min(8, 128 // obs_dim)) if obs_dim < 128 else 1

    D = r * obs_dim                     # packed input row width
    Hh = r * hidden                     # packed hidden width
    lane_d = _round_up(D, 128)
    lane_h = _round_up(Hh, 128)

    # VMEM budget for picking the batch tile: double-buffered x tile + h/u
    # temporaries + double-buffered (lane-padded) output tile + resident
    # weights; kept under v5e's 16 MiB scoped default (also fine for v7x).
    w_bytes = 8 * (D * lane_h + 8 * lane_h + Hh * 128)
    budget = 12 * 1024 * 1024 - w_bytes
    per_prow = 4 * (2 * lane_d + 2 * lane_h + 2 * 128)
    cap_p = max(8, (budget // per_prow) // 8 * 8)

    tb_p_max = max(8, (min(block_b // r, cap_p) // 8) * 8)

    # Split the (packed) batch evenly into the minimum number of tiles of at
    # most tb_p_max rows, preferring an even tile count so the "parallel"
    # batch axis load-balances across v7x's two TensorCores. Even splitting
    # keeps the pad waste to a few rows per tile.
    bp = _cdiv(B, r)
    num_tiles = _cdiv(bp, tb_p_max)
    if num_tiles > 1 and num_tiles % 2 == 1:
        num_tiles += 1
    tb_p = max(8, _round_up(_cdiv(bp, num_tiles), 8))
    num_tiles = _cdiv(bp, tb_p)

    b_pad = num_tiles * tb_p * r
    if b_pad != B:
        # TODO(synk): callers that control B should pick a multiple of the tile
        # (num_tiles * tb_p * r) to avoid this pad copy of x.
        x = jnp.pad(x, ((0, b_pad - B), (0, 0)))
    bp_pad = b_pad // r

    # Repack r samples per row (free row-major reshape) and build the matching
    # block-diagonal weights so FC1/FC3 act independently on each lane group.
    x_p = x.reshape(bp_pad, D)
    eye_r = jnp.eye(r, dtype=w1.dtype)
    w1_blk = (eye_r[:, None, :, None] * w1[None, :, None, :]).reshape(D, Hh)
    b1_row = jnp.tile(b1.reshape(1, hidden), (1, r))              # (1, r*64)
    w2_blk = (eye_r[:, None, :] * w2.reshape(1, hidden, 1)).reshape(Hh, r)
    b2_s = b2.reshape(1, 1)

    cost = pl.CostEstimate(
        flops=2 * B * obs_dim * hidden + 2 * B * hidden,
        transcendentals=0,
        bytes_accessed=4 * (B * obs_dim + B + obs_dim * hidden + 2 * hidden + 1),
    )

    out = pl.pallas_call(
        critic_kernel,
        out_shape=jax.ShapeDtypeStruct((bp_pad, r), jnp.float32),
        grid=(num_tiles,),
        in_specs=[
            pl.BlockSpec((tb_p, D), lambda i: (i, 0)),        # x: streamed, lane-dense rows
            pl.BlockSpec((D, Hh), lambda i: (0, 0)),          # block-diag W1 (resident)
            pl.BlockSpec((1, Hh), lambda i: (0, 0)),          # tiled b1 row
            pl.BlockSpec((Hh, r), lambda i: (0, 0)),          # block-diag W2
            pl.BlockSpec(memory_space=pltpu.MemorySpace.SMEM),  # b2 scalar in SMEM
        ],
        out_specs=pl.BlockSpec((tb_p, r), lambda i: (i, 0)),
        compiler_params=pltpu.CompilerParams(
            dimension_semantics=("parallel",),
            vmem_limit_bytes=32 * 1024 * 1024,
        ),
        cost_estimate=cost,
    )(x_p, w1_blk, b1_row, w2_blk, b2_s)

    # (bp_pad, r) -> (B, 1); packed row j, group g is sample j*r + g.
    return out.reshape(b_pad)[:B].reshape(B, 1)


def init_critic_params(key, obs_dim, hidden=HIDDEN):
    """Deterministic init mimicking PyTorch nn.Linear default U[-1/sqrt(fan_in), +]."""
    k1, k2, k3, k4 = jax.random.split(key, 4)
    bound1 = 1.0 / jnp.sqrt(obs_dim)
    bound2 = 1.0 / jnp.sqrt(hidden)
    w1 = jax.random.uniform(k1, (obs_dim, hidden), jnp.float32, -bound1, bound1)
    b1 = jax.random.uniform(k2, (hidden,), jnp.float32, -bound1, bound1)
    w2 = jax.random.uniform(k3, (hidden, 1), jnp.float32, -bound2, bound2)
    b2 = jax.random.uniform(k4, (1,), jnp.float32, -bound2, bound2)
    return w1, b1, w2, b2


def _reference(x, w1, b1, w2, b2):
    return jnp.maximum(x @ w1 + b1.reshape(1, -1), 0.0) @ w2 + b2.reshape(1, 1)


if __name__ == "__main__":
    key = jax.random.PRNGKey(0)
    k_x, k_x2, k_x3, k_p, k_p3 = jax.random.split(key, 5)

    batch, obs_dim = 8, 32
    x = jax.random.normal(k_x, (batch, obs_dim), jnp.float32)
    w1, b1, w2, b2 = init_critic_params(k_p, obs_dim)

    # Small-batch, lane-packed path (r = 4, single tile).
    out = jax.block_until_ready(critic_forward(x, w1, b1, w2, b2))
    ref = _reference(x, w1, b1, w2, b2)
    assert out.shape == (batch, 1)
    assert jnp.allclose(out, ref, atol=1e-4, rtol=1e-4)

    # Multi-tile + padded path (small block_b to force several grid steps).
    batch2 = 1000
    x2 = jax.random.normal(k_x2, (batch2, obs_dim), jnp.float32)
    out2 = jax.block_until_ready(critic_forward(x2, w1, b1, w2, b2, block_b=256))
    ref2 = _reference(x2, w1, b1, w2, b2)
    assert out2.shape == (batch2, 1)
    assert jnp.allclose(out2, ref2, atol=1e-4, rtol=1e-4)

    # Unpacked path (obs_dim >= 128 -> r = 1).
    batch3, obs_dim3 = 16, 160
    x3 = jax.random.normal(k_x3, (batch3, obs_dim3), jnp.float32)
    w1c, b1c, w2c, b2c = init_critic_params(k_p3, obs_dim3)
    out3 = jax.block_until_ready(critic_forward(x3, w1c, b1c, w2c, b2c))
    ref3 = _reference(x3, w1c, b1c, w2c, b2c)
    assert out3.shape == (batch3, 1)
    assert jnp.allclose(out3, ref3, atol=1e-4, rtol=1e-4)

    print("KERNEL_OK")
</pallas_src>

<mosaic_0001>
module attributes {stable_mosaic.version = 11 : i64} {
  func.func @critic_kernel(%arg0: i32, %arg1: memref<8x128xf32, #tpu.memory_space<vmem>>, %arg2: memref<128x256xf32, #tpu.memory_space<vmem>>, %arg3: memref<1x256xf32, #tpu.memory_space<vmem>>, %arg4: memref<256x4xf32, #tpu.memory_space<vmem>>, %arg5: memref<1x1xf32, #tpu.memory_space<smem>>, %arg6: memref<8x4xf32, #tpu.memory_space<vmem>>) attributes {dimension_semantics = [#tpu.dimension_semantics<parallel>], iteration_bounds = array<i64: 1>, scalar_prefetch = 0 : i64, scratch_operands = 0 : i64, tpu.core_type = #tpu.core_type<tc>, window_params = [{transform_indices = @transform_0, window_bounds = array<i64: 8, 128>}, {pipeline_mode = #tpu.pipeline_mode<synchronous>, transform_indices = @transform_1, window_bounds = array<i64: 128, 256>}, {pipeline_mode = #tpu.pipeline_mode<synchronous>, transform_indices = @transform_2, window_bounds = array<i64: 1, 256>}, {pipeline_mode = #tpu.pipeline_mode<synchronous>, transform_indices = @transform_3, window_bounds = array<i64: 256, 4>}, {transform_indices = @transform_4, window_bounds = array<i64: 1, 1>}, {transform_indices = @transform_5, window_bounds = array<i64: 8, 4>}]} {
    %c0 = arith.constant 0 : index
    %c0_0 = arith.constant 0 : index
    %0 = vector.load %arg1[%c0, %c0_0] : memref<8x128xf32, #tpu.memory_space<vmem>>, vector<8x128xf32>
    %c0_1 = arith.constant 0 : index
    %c0_2 = arith.constant 0 : index
    %1 = vector.load %arg2[%c0_1, %c0_2] : memref<128x256xf32, #tpu.memory_space<vmem>>, vector<128x256xf32>
    %cst = arith.constant dense<0.000000e+00> : vector<8x256xf32>
    %2 = tpu.matmul %0, %1, %cst {dimension_numbers = #tpu.dot_dimension_numbers<[1], [0], [0], [1], [0, 0, 1, 1], [], []>} : vector<8x128xf32>, vector<128x256xf32>, vector<8x256xf32> -> vector<8x256xf32>
    %c0_3 = arith.constant 0 : index
    %c0_4 = arith.constant 0 : index
    %3 = vector.load %arg3[%c0_3, %c0_4] : memref<1x256xf32, #tpu.memory_space<vmem>>, vector<1x256xf32>
    %4 = vector.broadcast %3 : vector<1x256xf32> to vector<8x256xf32>
    %5 = arith.addf %2, %4 : vector<8x256xf32>
    %cst_5 = arith.constant 0.000000e+00 : f32
    %6 = vector.broadcast %cst_5 : f32 to vector<8x256xf32>
    %7 = arith.maximumf %5, %6 : vector<8x256xf32>
    %c0_6 = arith.constant 0 : index
    %c0_7 = arith.constant 0 : index
    %8 = vector.load %arg4[%c0_6, %c0_7] : memref<256x4xf32, #tpu.memory_space<vmem>>, vector<256x4xf32>
    %cst_8 = arith.constant dense<0.000000e+00> : vector<8x4xf32>
    %9 = tpu.matmul %7, %8, %cst_8 {dimension_numbers = #tpu.dot_dimension_numbers<[1], [0], [0], [1], [0, 0, 1, 1], [], []>} : vector<8x256xf32>, vector<256x4xf32>, vector<8x4xf32> -> vector<8x4xf32>
    %c0_9 = arith.constant 0 : index
    %c0_10 = arith.constant 0 : index
    %10 = memref.load %arg5[%c0_9, %c0_10] : memref<1x1xf32, #tpu.memory_space<smem>>
    %11 = vector.broadcast %10 : f32 to vector<8x4xf32>
    %12 = arith.addf %9, %11 : vector<8x4xf32>
    %c0_11 = arith.constant 0 : index
    %c0_12 = arith.constant 0 : index
    %13 = vector.load %arg6[%c0_11, %c0_12] : memref<8x4xf32, #tpu.memory_space<vmem>>, vector<8x4xf32>
    tpu.vector_store %arg6[%c0_11, %c0_12], %12 {strides = array<i32>} : memref<8x4xf32, #tpu.memory_space<vmem>>, vector<8x4xf32>,
    return
  }
  func.func @transform_0(%arg0: i32) -> (i32, i32) {
    %c0_i32 = arith.constant 0 : i32
    %c0_i32_0 = arith.constant 0 : i32
    return %arg0, %c0_i32 : i32, i32
  }
  func.func @transform_1(%arg0: i32) -> (i32, i32) {
    %c0_i32 = arith.constant 0 : i32
    %c0_i32_0 = arith.constant 0 : i32
    %c0_i32_1 = arith.constant 0 : i32
    return %c0_i32, %c0_i32_0 : i32, i32
  }
  func.func @transform_2(%arg0: i32) -> (i32, i32) {
    %c0_i32 = arith.constant 0 : i32
    %c0_i32_0 = arith.constant 0 : i32
    %c0_i32_1 = arith.constant 0 : i32
    return %c0_i32, %c0_i32_0 : i32, i32
  }
  func.func @transform_3(%arg0: i32) -> (i32, i32) {
    %c0_i32 = arith.constant 0 : i32
    %c0_i32_0 = arith.constant 0 : i32
    %c0_i32_1 = arith.constant 0 : i32
    return %c0_i32, %c0_i32_0 : i32, i32
  }
  func.func @transform_4(%arg0: i32) -> (i32, i32) {
    %c0_i32 = arith.constant 0 : i32
    %c0_i32_0 = arith.constant 0 : i32
    %c0_i32_1 = arith.constant 0 : i32
    return %c0_i32, %c0_i32_0 : i32, i32
  }
  func.func @transform_5(%arg0: i32) -> (i32, i32) {
    %c0_i32 = arith.constant 0 : i32
    %c0_i32_0 = arith.constant 0 : i32
    return %arg0, %c0_i32 : i32, i32
  }
}

</mosaic_0001>

<llo_original>
// kernel: critic_forward.1
$region0: #{critic_forward.1}
  #allocation0 [shape = 'u32[]', space=smem, size = 0x4, offset = 0x4, fixed_abs, tag = 'smem constant byte address 0x4 - core index']
  #allocation1 [shape = 'u32[72,128]{1,0:T(1,128)}', space=vmem, size = 0x9000, scoped, tag = 'internal scratch']
  #allocation2 [shape = 'f32[1,1]{1,0:T(1,128)S(6)}', space=smem, size = 0x200, scoped, tag = 'scoped memory for critic_forward.1']
  %s0 = inlined_call_operand.vmem [shape: f32[8,128], index: 0, kind: input, shape index: {}]
  %s1 = inlined_call_operand.vmem [shape: f32[128,256], index: 1, kind: input, shape index: {}]
  %s2 = inlined_call_operand.vmem [shape: f32[1,256], index: 2, kind: input, shape index: {}]
  %s3 = inlined_call_operand.vmem [shape: f32[256,4], index: 3, kind: input, shape index: {}]
  %s4 = inlined_call_operand.<no memory space> [shape: f32[1,1], index: 4, kind: input, shape index: {}]
  %s5 = inlined_call_operand.vmem [shape: f32[8,4], index: 5, kind: output, shape index: {}]
  %s6 = sld [smem:[#allocation0]]
  $region30: #{critic_forward.1} parent=0
    _
  %s8 = ssub.s32 1, %s6
  %s9 = scalar_select 0, %s8, %s6
  %10 = sst [smem:[#allocation2]] %s4
  // Predicated region
  $region2: #{critic_forward.1} parent=0 // pred_check
    _
  $region3: #{critic_forward.1} parent=0 // pred_check_branch
    %12 = sbr.rel (0) target = $region5
  $region4: #{critic_forward.1} parent=0 // pred_region
    _
  $region5: #{critic_forward.1} parent=0 // pred_fallthru
    _
  // Predicated region
  $region6: #{critic_forward.1} parent=0 // pred_check
    _
  $region7: #{critic_forward.1} parent=0 // pred_check_branch
    %14 = sbr.rel (0) target = $region9
  $region8: #{critic_forward.1} parent=0 // pred_region
    _
  $region9: #{critic_forward.1} parent=0 // pred_fallthru
    _
  // Predicated region
  $region10: #{critic_forward.1} parent=0 // pred_check
    _
  $region11: #{critic_forward.1} parent=0 // pred_check_branch
    %16 = sbr.rel (0) target = $region13
  $region12: #{critic_forward.1} parent=0 // pred_region
    _
  $region13: #{critic_forward.1} parent=0 // pred_fallthru
    _
  // Predicated region
  $region14: #{critic_forward.1} parent=0 // pred_check
    _
  $region15: #{critic_forward.1} parent=0 // pred_check_branch
    %18 = sbr.rel (0) target = $region17
  $region16: #{critic_forward.1} parent=0 // pred_region
    _
  $region17: #{critic_forward.1} parent=0 // pred_fallthru
    _
  // Predicated region
  $region18: #{critic_forward.1} parent=0 // pred_check
    _
  $region19: #{critic_forward.1} parent=0 // pred_check_branch
    %20 = sbr.rel (0) target = $region21
  $region20: #{critic_forward.1} parent=0 // pred_region
    _
  $region21: #{critic_forward.1} parent=0 // pred_fallthru
    _
  %v21 = vld [vmem:[%s0] sm:$0xff]
  %v22 = vld [vmem:[%s1] sm:$0xff]
  %v23 = vld [vmem:[%s1 + $0x8] sm:$0xff]
  %v24 = vld [vmem:[%s1 + $0x10] sm:$0xff]
  %v25 = vld [vmem:[%s1 + $0x18] sm:$0xff]
  %v26 = vld [vmem:[%s1 + $0x20] sm:$0xff]
  %v27 = vld [vmem:[%s1 + $0x28] sm:$0xff]
  %v28 = vld [vmem:[%s1 + $0x30] sm:$0xff]
  %v29 = vld [vmem:[%s1 + $0x38] sm:$0xff]
  %v30 = vld [vmem:[%s1 + $0x40] sm:$0xff]
  %v31 = vld [vmem:[%s1 + $0x48] sm:$0xff]
  %v32 = vld [vmem:[%s1 + $0x50] sm:$0xff]
  %v33 = vld [vmem:[%s1 + $0x58] sm:$0xff]
  %v34 = vld [vmem:[%s1 + $0x60] sm:$0xff]
  %v35 = vld [vmem:[%s1 + $0x68] sm:$0xff]
  %v36 = vld [vmem:[%s1 + $0x70] sm:$0xff]
  %v37 = vld [vmem:[%s1 + $0x78] sm:$0xff]
  %v38 = vld [vmem:[%s1 + $0x80] sm:$0xff]
  %v39 = vld [vmem:[%s1 + $0x88] sm:$0xff]
  %v40 = vld [vmem:[%s1 + $0x90] sm:$0xff]
  %v41 = vld [vmem:[%s1 + $0x98] sm:$0xff]
  %v42 = vld [vmem:[%s1 + $0xa0] sm:$0xff]
  %v43 = vld [vmem:[%s1 + $0xa8] sm:$0xff]
  %v44 = vld [vmem:[%s1 + $0xb0] sm:$0xff]
  %v45 = vld [vmem:[%s1 + $0xb8] sm:$0xff]
  %v46 = vld [vmem:[%s1 + $0xc0] sm:$0xff]
  %v47 = vld [vmem:[%s1 + $0xc8] sm:$0xff]
  %v48 = vld [vmem:[%s1 + $0xd0] sm:$0xff]
  %v49 = vld [vmem:[%s1 + $0xd8] sm:$0xff]
  %v50 = vld [vmem:[%s1 + $0xe0] sm:$0xff]
  %v51 = vld [vmem:[%s1 + $0xe8] sm:$0xff]
  %v52 = vld [vmem:[%s1 + $0xf0] sm:$0xff]
  %v53 = vld [vmem:[%s1 + $0xf8] sm:$0xff]
  %v54 = vld [vmem:[%s2] sm:$0x3]
  %v56 = vperm.slane %v54, 0
  %v57 = vperm.slane %v54, 1
  %60 = vmatpush.msra.mxu0 %v52
  %61 = vmatpush.msra.mxu0 %v50
  %62 = vmatpush.msra.mxu0 %v48
  %63 = vmatpush.msra.mxu0 %v46
  %64 = vmatpush.msra.mxu0 %v44
  %65 = vmatpush.msra.mxu0 %v42
  %66 = vmatpush.msra.mxu0 %v40
  %67 = vmatpush.msra.mxu0 %v38
  %68 = vmatpush.msra.mxu0 %v36
  %69 = vmatpush.msra.mxu0 %v34
  %70 = vmatpush.msra.mxu0 %v32
  %71 = vmatpush.msra.mxu0 %v30
  %72 = vmatpush.msra.mxu0 %v28
  %73 = vmatpush.msra.mxu0 %v26
  %74 = vmatpush.msra.mxu0 %v24
  %75 = vmatpush.msra.mxu0 %v22
  %76 = vmatmul.f32.gmra.mxu0 %v21
  %v77 = vpop.f32.mrf.mxu0
  %v78 = vadd.f32 %v56, %v77
  %79 = vdwg.mxu0
  %80 = vmatpush.msra.mxu0 %v53
  %81 = vmatpush.msra.mxu0 %v51
  %82 = vmatpush.msra.mxu0 %v49
  %83 = vmatpush.msra.mxu0 %v47
  %84 = vmatpush.msra.mxu0 %v45
  %85 = vmatpush.msra.mxu0 %v43
  %86 = vmatpush.msra.mxu0 %v41
  %87 = vmatpush.msra.mxu0 %v39
  %88 = vmatpush.msra.mxu0 %v37
  %89 = vmatpush.msra.mxu0 %v35
  %90 = vmatpush.msra.mxu0 %v33
  %91 = vmatpush.msra.mxu0 %v31
  %92 = vmatpush.msra.mxu0 %v29
  %93 = vmatpush.msra.mxu0 %v27
  %94 = vmatpush.msra.mxu0 %v25
  %95 = vmatpush.msra.mxu0 %v23
  %96 = vmatmul.f32.gmra.mxu0 %v21
  %v97 = vpop.f32.mrf.mxu0
  %v98 = vadd.f32 %v57, %v97
  %99 = vdwg.mxu0
  %v100 = vmax.f32 %v78, 0.0
  %v101 = vmax.f32 %v98, 0.0
  %v102 = vld [vmem:[%s3] sm:$0xff]
  %v103 = vld [vmem:[%s3 + $0x8] sm:$0xff]
  %v104 = vld [vmem:[%s3 + $0x10] sm:$0xff]
  %v105 = vld [vmem:[%s3 + $0x18] sm:$0xff]
  %v106 = vld [vmem:[%s3 + $0x20] sm:$0xff]
  %v107 = vld [vmem:[%s3 + $0x28] sm:$0xff]
  %v108 = vld [vmem:[%s3 + $0x30] sm:$0xff]
  %v109 = vld [vmem:[%s3 + $0x38] sm:$0xff]
  %v110 = vld [vmem:[%s3 + $0x40] sm:$0xff]
  %v111 = vld [vmem:[%s3 + $0x48] sm:$0xff]
  %v112 = vld [vmem:[%s3 + $0x50] sm:$0xff]
  %v113 = vld [vmem:[%s3 + $0x58] sm:$0xff]
  %v114 = vld [vmem:[%s3 + $0x60] sm:$0xff]
  %v115 = vld [vmem:[%s3 + $0x68] sm:$0xff]
  %v116 = vld [vmem:[%s3 + $0x70] sm:$0xff]
  %v117 = vld [vmem:[%s3 + $0x78] sm:$0xff]
  %v118 = vld [vmem:[%s3 + $0x80] sm:$0xff]
  %v119 = vld [vmem:[%s3 + $0x88] sm:$0xff]
  %v120 = vld [vmem:[%s3 + $0x90] sm:$0xff]
  %v121 = vld [vmem:[%s3 + $0x98] sm:$0xff]
  %v122 = vld [vmem:[%s3 + $0xa0] sm:$0xff]
  %v123 = vld [vmem:[%s3 + $0xa8] sm:$0xff]
  %v124 = vld [vmem:[%s3 + $0xb0] sm:$0xff]
  %v125 = vld [vmem:[%s3 + $0xb8] sm:$0xff]
  %v126 = vld [vmem:[%s3 + $0xc0] sm:$0xff]
  %v127 = vld [vmem:[%s3 + $0xc8] sm:$0xff]
  %v128 = vld [vmem:[%s3 + $0xd0] sm:$0xff]
  %v129 = vld [vmem:[%s3 + $0xd8] sm:$0xff]
  %v130 = vld [vmem:[%s3 + $0xe0] sm:$0xff]
  %v131 = vld [vmem:[%s3 + $0xe8] sm:$0xff]
  %v132 = vld [vmem:[%s3 + $0xf0] sm:$0xff]
  %v133 = vld [vmem:[%s3 + $0xf8] sm:$0xff]
  %s134 = sld [smem:[#allocation2]]
  %v135 = vstv %s134
  %136 = vmatpush.msra.mxu0 %v117
  %137 = vmatpush.msra.mxu0 %v116
  %138 = vmatpush.msra.mxu0 %v115
  %139 = vmatpush.msra.mxu0 %v114
  %140 = vmatpush.msra.mxu0 %v113
  %141 = vmatpush.msra.mxu0 %v112
  %142 = vmatpush.msra.mxu0 %v111
  %143 = vmatpush.msra.mxu0 %v110
  %144 = vmatpush.msra.mxu0 %v109
  %145 = vmatpush.msra.mxu0 %v108
  %146 = vmatpush.msra.mxu0 %v107
  %147 = vmatpush.msra.mxu0 %v106
  %148 = vmatpush.msra.mxu0 %v105
  %149 = vmatpush.msra.mxu0 %v104
  %150 = vmatpush.msra.mxu0 %v103
  %151 = vmatpush.msra.mxu0 %v102
  %152 = vmatmul.f32.gmra.mxu0 %v100
  %v153 = vpop.f32.mrf.mxu0
  %v154 = vadd.f32 %v135, %v153
  %155 = vdwg.mxu0
  %156 = vmatpush.msra.mxu0 %v133
  %157 = vmatpush.msra.mxu0 %v132
  %158 = vmatpush.msra.mxu0 %v131
  %159 = vmatpush.msra.mxu0 %v130
  %160 = vmatpush.msra.mxu0 %v129
  %161 = vmatpush.msra.mxu0 %v128
  %162 = vmatpush.msra.mxu0 %v127
  %163 = vmatpush.msra.mxu0 %v126
  %164 = vmatpush.msra.mxu0 %v125
  %165 = vmatpush.msra.mxu0 %v124
  %166 = vmatpush.msra.mxu0 %v123
  %167 = vmatpush.msra.mxu0 %v122
  %168 = vmatpush.msra.mxu0 %v121
  %169 = vmatpush.msra.mxu0 %v120
  %170 = vmatpush.msra.mxu0 %v119
  %171 = vmatpush.msra.mxu0 %v118
  %172 = vmatmul.f32.gmra.mxu0 %v101
  %v173 = vpop.f32.mrf.mxu0
  %v174 = vadd.f32 %v154, %v173
  %175 = vdwg.mxu0
  %vm176 = vcmask 31744
  %177 = vst.msk [vmem:[%s5] sm:$0xff] %vm176, %v174
  // Predicated region
  $region22: #{critic_forward.1} parent=0 // pred_check
    _
  $region23: #{critic_forward.1} parent=0 // pred_check_branch
    %179 = sbr.rel (0) target = $region25
  $region24: #{critic_forward.1} parent=0 // pred_region
    _
  $region25: #{critic_forward.1} parent=0 // pred_fallthru
    _
  // Predicated region
  $region26: #{critic_forward.1} parent=0 // pred_check
    _
  $region27: #{critic_forward.1} parent=0 // pred_check_branch
    %181 = sbr.rel (0) target = $region29
  $region28: #{critic_forward.1} parent=0 // pred_region
    _
  $region29: #{critic_forward.1} parent=0 // pred_fallthru
    _

</llo_original>
